<compile_context>
chip_gen: v7x
topology: tpu7x:2x2x1
jax: 0.10.0
libtpu: 0.0.40
codegen_flags: <defaults>
</compile_context>

<pallas_src>
import functools

import numpy as np
import jax
import jax.numpy as jnp
from jax.experimental import pallas as pl
from jax.experimental.pallas import tpu as pltpu


# ----------------------------- glue helpers ---------------------------------

def chunk_idxs_by_size(size, chunk_size):
    idxs = list(range(0, size + 1, chunk_size))
    if idxs[-1] != size:
        idxs.append(size)
    return list(zip(idxs[:-1], idxs[1:]))


def _round_up(x, m):
    return (x + m - 1) // m * m


def _pool_out_size(n, pool, stride):
    # PyTorch ceil_mode output size ("last window must start inside input").
    out = int(np.ceil((n - pool) / stride)) + 1
    if (out - 1) * stride >= n:
        out -= 1
    return out


def _build_sum_pool(OH, OW, pool, stride):
    """0/1 sum-pool matrix (PHW, OHW) reproducing F.avg_pool2d(ceil_mode=True)
    window membership, plus per-output-row reciprocal counts (PHW,)."""
    PH = _pool_out_size(OH, pool, stride)
    PW = _pool_out_size(OW, pool, stride)
    Wm = np.zeros((PH * PW, OH * OW), dtype=np.float32)
    rcp = np.zeros((PH * PW,), dtype=np.float32)
    for ph in range(PH):
        h0 = ph * stride
        h1 = min(h0 + pool, OH)
        for pw in range(PW):
            w0 = pw * stride
            w1 = min(w0 + pool, OW)
            cnt = (h1 - h0) * (w1 - w0)
            rcp[ph * PW + pw] = 1.0 / cnt
            for oh in range(h0, h1):
                for ow in range(w0, w1):
                    Wm[ph * PW + pw, oh * OW + ow] = 1.0
    return Wm, rcp, PH, PW


def _im2col(x, P):
    """x: (N, C, H, W) -> (N, OH*OW, C*P*P); k = c*P*P + i*P + j (torch order)."""
    N, C, H, W = x.shape
    OH, OW = H - P + 1, W - P + 1
    cols = []
    for i in range(P):
        for j in range(P):
            cols.append(x[:, :, i:i + OH, j:j + OW])      # (N, C, OH, OW)
    patches = jnp.stack(cols, axis=2)                     # (N, C, P*P, OH, OW)
    patches = patches.reshape(N, C * P * P, OH * OW)
    return jnp.transpose(patches, (0, 2, 1)), OH, OW


def _pick_vmem_limit():
    """Most of this generation's VMEM (128 MiB v5e/v6e, 64 MiB v7x) - headroom."""
    try:
        cap = int(pltpu.get_tpu_info().vmem_capacity_bytes)
    except Exception:
        cap = 64 * 1024 * 1024
    return max(32 * 1024 * 1024, cap - 16 * 1024 * 1024)


def _pick_nb(N, OHW_pad, PHW_pad, K_pad, F_pad, in_bytes, vmem_limit):
    """Largest images-per-step (<=8) whose working set fits the VMEM budget."""
    budget = int(vmem_limit * 0.6)
    resident = 2 * (K_pad * F_pad + PHW_pad * OHW_pad) * in_bytes + 2 * PHW_pad * 4
    per_img = (2 * OHW_pad * K_pad * in_bytes        # patches (double-buffered)
               + 2 * PHW_pad * 2 * F_pad * 4         # output  (double-buffered)
               + OHW_pad * 2 * F_pad * in_bytes      # act scratch slab
               + OHW_pad * F_pad * 4)                # conv f32 intermediate
    nb = max(1, min(8, N))
    while nb > 1 and resident + nb * per_img > budget:
        nb -= 1
    return nb


# ------------------------------ Pallas kernel --------------------------------

def _coatesng_kernel(patches_ref, filt_ref, pool_ref, rcp_ref, out_ref, act_ref,
                     *, bias, nb, ohw_pad, f_pad):
    # patches_ref: (NB*OHW_pad, K_pad)    filt_ref: (K_pad, F_pad)     [resident]
    # pool_ref:    (PHW_pad, OHW_pad) 0/1 [resident]  rcp_ref: (PHW_pad, 1) f32
    # out_ref:     (NB, PHW_pad, 2*F_pad) f32
    # act_ref:     (NB*OHW_pad, 2*F_pad)  VMEM scratch (same dtype as operands)
    conv = jnp.dot(patches_ref[...], filt_ref[...],
                   preferred_element_type=jnp.float32)        # (NB*OHW_pad, F_pad)
    # Thresholded activations written straight into one lane-dense slab (no concat).
    act_ref[:, :f_pad] = jnp.maximum(conv - bias, 0.0).astype(act_ref.dtype)
    act_ref[:, f_pad:] = jnp.maximum(-conv - bias, 0.0).astype(act_ref.dtype)

    pool = pool_ref[...]
    rcp = rcp_ref[...]                                        # (PHW_pad, 1) f32
    for i in range(nb):                                       # static unroll
        pooled = jnp.dot(pool, act_ref[pl.ds(i * ohw_pad, ohw_pad), :],
                         preferred_element_type=jnp.float32)  # (PHW_pad, 2*F_pad)
        out_ref[i] = pooled * rcp                             # exact avg: sum * 1/cnt


def coatesng_forward(x, filters, patch_size=6, pool_size=2, pool_stride=2,
                     bias=1.0, filter_batch_size=1024, use_bf16=True):
    N, C, H, W = x.shape
    F = int(filters.shape[0])
    P = patch_size
    K = C * P * P

    # ---- host-side im2col (DMA'd once per image thanks to the grid layout) ----
    patches, OH, OW = _im2col(x.astype(jnp.float32), P)       # (N, OHW, K)
    OHW = OH * OW
    pool_np, rcp_np, PH, PW = _build_sum_pool(OH, OW, pool_size, pool_stride)
    PHW = PH * PW

    in_dtype = jnp.bfloat16 if use_bf16 else jnp.float32
    in_bytes = 2 if use_bf16 else 4
    sub = 16 if use_bf16 else 8        # bf16 packs 2 rows per sublane

    K_pad = _round_up(K, 128)
    F_pad = _round_up(F, 128)
    OHW_pad = _round_up(OHW, sub)
    PHW_pad = _round_up(PHW, sub)

    vmem_limit = _pick_vmem_limit()
    NB = _pick_nb(N, OHW_pad, PHW_pad, K_pad, F_pad, in_bytes, vmem_limit)
    N_pad = _round_up(N, NB)

    # patches: pre-flattened row layout (N_pad*OHW_pad, K_pad) -> no in-kernel reshape
    patches_p = jnp.zeros((N_pad, OHW_pad, K_pad), in_dtype)
    patches_p = patches_p.at[:N, :OHW, :K].set(patches.astype(in_dtype))
    patches_p = patches_p.reshape(N_pad * OHW_pad, K_pad)

    filt_np = np.zeros((K_pad, F_pad), np.float32)
    filt_np[:K, :F] = np.asarray(filters, np.float32).reshape(F, K).T
    filt_p = jnp.asarray(filt_np, dtype=in_dtype)

    pool_pad = np.zeros((PHW_pad, OHW_pad), np.float32)
    pool_pad[:PHW, :OHW] = pool_np                 # 0/1 entries: exact in bf16
    pool_p = jnp.asarray(pool_pad, dtype=in_dtype)

    rcp_pad = np.zeros((PHW_pad, 1), np.float32)
    rcp_pad[:PHW, 0] = rcp_np                      # f32 VPU rescale (exact average)
    rcp_p = jnp.asarray(rcp_pad)

    grid = (N_pad // NB,)
    flops = (2 * N_pad * OHW_pad * K_pad * F_pad
             + 2 * N_pad * PHW_pad * OHW_pad * 2 * F_pad)
    bytes_accessed = (patches_p.size * in_bytes + filt_p.size * in_bytes
                      + pool_p.size * in_bytes + rcp_p.size * 4
                      + N_pad * PHW_pad * 2 * F_pad * 4)

    kern = functools.partial(_coatesng_kernel, bias=float(bias), nb=NB,
                             ohw_pad=OHW_pad, f_pad=F_pad)
    pooled = pl.pallas_call(
        kern,
        out_shape=jax.ShapeDtypeStruct((N_pad, PHW_pad, 2 * F_pad), jnp.float32),
        grid_spec=pltpu.PrefetchScalarGridSpec(
            num_scalar_prefetch=0,
            grid=grid,
            in_specs=[
                pl.BlockSpec((NB * OHW_pad, K_pad), lambda b: (b, 0)),
                pl.BlockSpec((K_pad, F_pad), lambda b: (0, 0)),       # resident, DMA'd once
                pl.BlockSpec((PHW_pad, OHW_pad), lambda b: (0, 0)),   # resident
                pl.BlockSpec((PHW_pad, 1), lambda b: (0, 0)),         # resident
            ],
            out_specs=pl.BlockSpec((NB, PHW_pad, 2 * F_pad), lambda b: (b, 0, 0)),
            scratch_shapes=[pltpu.VMEM((NB * OHW_pad, 2 * F_pad), in_dtype)],
        ),
        compiler_params=pltpu.CompilerParams(
            dimension_semantics=("parallel",),
            vmem_limit_bytes=vmem_limit),
        cost_estimate=pl.CostEstimate(flops=flops, transcendentals=0,
                                      bytes_accessed=bytes_accessed),
    )(patches_p, filt_p, pool_p, rcp_p)

    # ---- epilogue: drop padding, restore torch per-chunk [pos, neg] channel order ----
    pooled = pooled[:N, :PHW, :]                               # (N, PHW, 2*F_pad)
    perm = []
    for s, e in chunk_idxs_by_size(F, filter_batch_size):
        perm.extend(range(s, e))                               # pos chunk (lanes [0, F))
        perm.extend(range(F_pad + s, F_pad + e))               # neg chunk (lanes [F_pad, F_pad+F))
    out = jnp.take(pooled, jnp.asarray(perm, dtype=np.int32), axis=-1)   # (N, PHW, 2F)
    out = out.reshape(N, PH, PW, 2 * F)
    return jnp.transpose(out, (0, 3, 1, 2))                    # (N, 2F, PH, PW)


# ------------------------------ pure-JAX reference ---------------------------

def coatesng_reference(x, filters, patch_size, pool_size, pool_stride, bias,
                       filter_batch_size):
    num_filters = filters.shape[0]
    conv_all = jax.lax.conv_general_dilated(
        x.astype(jnp.float32), jnp.asarray(filters, jnp.float32),
        window_strides=(1, 1), padding="VALID",
        dimension_numbers=("NCHW", "OIHW", "NCHW"))
    _, _, OH, OW = conv_all.shape
    PH = _pool_out_size(OH, pool_size, pool_stride)
    PW = _pool_out_size(OW, pool_size, pool_stride)

    def avg_pool_ceil(a):
        pad_h = (PH - 1) * pool_stride + pool_size - OH
        pad_w = (PW - 1) * pool_stride + pool_size - OW
        summed = jax.lax.reduce_window(
            a, 0.0, jax.lax.add,
            window_dimensions=(1, 1, pool_size, pool_size),
            window_strides=(1, 1, pool_stride, pool_stride),
            padding=((0, 0), (0, 0), (0, pad_h), (0, pad_w)))
        cnt_h = np.minimum(np.arange(PH) * pool_stride + pool_size, OH) - np.arange(PH) * pool_stride
        cnt_w = np.minimum(np.arange(PW) * pool_stride + pool_size, OW) - np.arange(PW) * pool_stride
        cnt = (cnt_h[:, None] * cnt_w[None, :]).astype(np.float32)
        return summed / cnt[None, None]

    outs = []
    for start, end in chunk_idxs_by_size(num_filters, filter_batch_size):
        c = conv_all[:, start:end]
        pos = avg_pool_ceil(jnp.maximum(c - bias, 0.0))
        neg = avg_pool_ceil(jnp.maximum(-c - bias, 0.0))
        outs.append(jnp.concatenate([pos, neg], axis=1))
    return jnp.concatenate(outs, axis=1)


# ----------------------------------- main -------------------------------------

if __name__ == "__main__":
    key = jax.random.PRNGKey(0)
    k1, k2 = jax.random.split(key)

    N, C, H, W = 2, 3, 16, 16
    patch_size, pool_size, pool_stride, bias = 6, 2, 2, 1.0
    num_filters, filter_batch_size = 16, 8   # two filter chunks (exercises chunk ordering)

    x = jax.random.normal(k1, (N, C, H, W), dtype=jnp.float32)
    filters = np.asarray(
        jax.random.normal(k2, (num_filters, C, patch_size, patch_size),
                          dtype=jnp.float32))

    ref = jax.block_until_ready(
        coatesng_reference(x, filters, patch_size, pool_size, pool_stride,
                           bias, filter_batch_size))

    # f32 operand path: bit-faithful to the PyTorch module.
    out_f32 = jax.block_until_ready(
        coatesng_forward(x, filters, patch_size, pool_size, pool_stride,
                         bias, filter_batch_size, use_bf16=False))
    assert out_f32.shape == (N, 2 * num_filters, 6, 6), out_f32.shape
    np.testing.assert_allclose(np.asarray(out_f32), np.asarray(ref),
                               atol=2e-4, rtol=2e-4)

    # Default bf16-operand path (MXU peak on v5e/v6e/v7x), f32 accumulation.
    out_bf16 = jax.block_until_ready(
        coatesng_forward(x, filters, patch_size, pool_size, pool_stride,
                         bias, filter_batch_size))
    assert out_bf16.shape == out_f32.shape
    np.testing.assert_allclose(np.asarray(out_bf16), np.asarray(ref),
                               atol=0.25, rtol=0.05)

    print("KERNEL_OK")
</pallas_src>

<mosaic_0001>
module attributes {stable_mosaic.version = 11 : i64} {
  func.func @_coatesng_kernel(%arg0: i32, %arg1: memref<256x128xf32, #tpu.memory_space<vmem>>, %arg2: memref<128x128xf32, #tpu.memory_space<vmem>>, %arg3: memref<40x128xf32, #tpu.memory_space<vmem>>, %arg4: memref<40x1xf32, #tpu.memory_space<vmem>>, %arg5: memref<2x40x256xf32, #tpu.memory_space<vmem>>, %arg6: memref<256x256xf32, #tpu.memory_space<vmem>>) attributes {dimension_semantics = [#tpu.dimension_semantics<parallel>], iteration_bounds = array<i64: 1>, scalar_prefetch = 0 : i64, scratch_operands = 1 : i64, tpu.core_type = #tpu.core_type<tc>, window_params = [{transform_indices = @transform_0, window_bounds = array<i64: 256, 128>}, {pipeline_mode = #tpu.pipeline_mode<synchronous>, transform_indices = @transform_1, window_bounds = array<i64: 128, 128>}, {pipeline_mode = #tpu.pipeline_mode<synchronous>, transform_indices = @transform_2, window_bounds = array<i64: 40, 128>}, {pipeline_mode = #tpu.pipeline_mode<synchronous>, transform_indices = @transform_3, window_bounds = array<i64: 40, 1>}, {transform_indices = @transform_4, window_bounds = array<i64: 2, 40, 256>}]} {
    %c0 = arith.constant 0 : index
    %c0_0 = arith.constant 0 : index
    %0 = vector.load %arg1[%c0, %c0_0] : memref<256x128xf32, #tpu.memory_space<vmem>>, vector<256x128xf32>
    %c0_1 = arith.constant 0 : index
    %c0_2 = arith.constant 0 : index
    %1 = vector.load %arg2[%c0_1, %c0_2] : memref<128x128xf32, #tpu.memory_space<vmem>>, vector<128x128xf32>
    %cst = arith.constant dense<0.000000e+00> : vector<256x128xf32>
    %2 = tpu.matmul %0, %1, %cst {dimension_numbers = #tpu.dot_dimension_numbers<[1], [0], [0], [1], [0, 0, 1, 1], [], []>} : vector<256x128xf32>, vector<128x128xf32>, vector<256x128xf32> -> vector<256x128xf32>
    %cst_3 = arith.constant 1.000000e+00 : f32
    %3 = vector.broadcast %cst_3 : f32 to vector<256x128xf32>
    %4 = arith.subf %2, %3 : vector<256x128xf32>
    %cst_4 = arith.constant 0.000000e+00 : f32
    %5 = vector.broadcast %cst_4 : f32 to vector<256x128xf32>
    %6 = arith.maximumf %4, %5 : vector<256x128xf32>
    %c0_5 = arith.constant 0 : index
    %c0_6 = arith.constant 0 : index
    %7 = vector.load %arg6[%c0_5, %c0_6] : memref<256x256xf32, #tpu.memory_space<vmem>>, vector<256x128xf32>
    tpu.vector_store %arg6[%c0_5, %c0_6], %6 {strides = array<i32>} : memref<256x256xf32, #tpu.memory_space<vmem>>, vector<256x128xf32>,
    %cst_7 = arith.constant 0.000000e+00 : f32
    %8 = vector.broadcast %cst_7 : f32 to vector<256x128xf32>
    %9 = arith.subf %8, %2 : vector<256x128xf32>
    %cst_8 = arith.constant 1.000000e+00 : f32
    %10 = vector.broadcast %cst_8 : f32 to vector<256x128xf32>
    %11 = arith.subf %9, %10 : vector<256x128xf32>
    %cst_9 = arith.constant 0.000000e+00 : f32
    %12 = vector.broadcast %cst_9 : f32 to vector<256x128xf32>
    %13 = arith.maximumf %11, %12 : vector<256x128xf32>
    %c0_10 = arith.constant 0 : index
    %c128 = arith.constant 128 : index
    %14 = vector.load %arg6[%c0_10, %c128] : memref<256x256xf32, #tpu.memory_space<vmem>>, vector<256x128xf32>
    tpu.vector_store %arg6[%c0_10, %c128], %13 {strides = array<i32>} : memref<256x256xf32, #tpu.memory_space<vmem>>, vector<256x128xf32>,
    %c0_11 = arith.constant 0 : index
    %c0_12 = arith.constant 0 : index
    %15 = vector.load %arg3[%c0_11, %c0_12] : memref<40x128xf32, #tpu.memory_space<vmem>>, vector<40x128xf32>
    %c0_13 = arith.constant 0 : index
    %c0_14 = arith.constant 0 : index
    %16 = vector.load %arg4[%c0_13, %c0_14] : memref<40x1xf32, #tpu.memory_space<vmem>>, vector<40x1xf32>
    %c0_15 = arith.constant 0 : index
    %c0_16 = arith.constant 0 : index
    %17 = vector.load %arg6[%c0_15, %c0_16] : memref<256x256xf32, #tpu.memory_space<vmem>>, vector<128x256xf32>
    %cst_17 = arith.constant dense<0.000000e+00> : vector<40x256xf32>
    %18 = tpu.matmul %15, %17, %cst_17 {dimension_numbers = #tpu.dot_dimension_numbers<[1], [0], [0], [1], [0, 0, 1, 1], [], []>} : vector<40x128xf32>, vector<128x256xf32>, vector<40x256xf32> -> vector<40x256xf32>
    %19 = vector.broadcast %16 : vector<40x1xf32> to vector<40x256xf32>
    %20 = arith.mulf %18, %19 : vector<40x256xf32>
    %c0_18 = arith.constant 0 : index
    %c0_19 = arith.constant 0 : index
    %c0_20 = arith.constant 0 : index
    %21 = vector.load %arg5[%c0_18, %c0_19, %c0_20] : memref<2x40x256xf32, #tpu.memory_space<vmem>>, vector<1x40x256xf32>
    %22 = vector.shape_cast %21 : vector<1x40x256xf32> to vector<40x256xf32>
    %23 = vector.shape_cast %20 : vector<40x256xf32> to vector<1x40x256xf32>
    tpu.vector_store %arg5[%c0_18, %c0_19, %c0_20], %23 {strides = array<i32>} : memref<2x40x256xf32, #tpu.memory_space<vmem>>, vector<1x40x256xf32>,
    %c128_21 = arith.constant 128 : index
    %c0_22 = arith.constant 0 : index
    %24 = vector.load %arg6[%c128_21, %c0_22] : memref<256x256xf32, #tpu.memory_space<vmem>>, vector<128x256xf32>
    %cst_23 = arith.constant dense<0.000000e+00> : vector<40x256xf32>
    %25 = tpu.matmul %15, %24, %cst_23 {dimension_numbers = #tpu.dot_dimension_numbers<[1], [0], [0], [1], [0, 0, 1, 1], [], []>} : vector<40x128xf32>, vector<128x256xf32>, vector<40x256xf32> -> vector<40x256xf32>
    %26 = vector.broadcast %16 : vector<40x1xf32> to vector<40x256xf32>
    %27 = arith.mulf %25, %26 : vector<40x256xf32>
    %c1 = arith.constant 1 : index
    %c0_24 = arith.constant 0 : index
    %c0_25 = arith.constant 0 : index
    %28 = vector.load %arg5[%c1, %c0_24, %c0_25] : memref<2x40x256xf32, #tpu.memory_space<vmem>>, vector<1x40x256xf32>
    %29 = vector.shape_cast %28 : vector<1x40x256xf32> to vector<40x256xf32>
    %30 = vector.shape_cast %27 : vector<40x256xf32> to vector<1x40x256xf32>
    tpu.vector_store %arg5[%c1, %c0_24, %c0_25], %30 {strides = array<i32>} : memref<2x40x256xf32, #tpu.memory_space<vmem>>, vector<1x40x256xf32>,
    return
  }
  func.func @transform_0(%arg0: i32) -> (i32, i32) {
    %c0_i32 = arith.constant 0 : i32
    %c0_i32_0 = arith.constant 0 : i32
    return %arg0, %c0_i32 : i32, i32
  }
  func.func @transform_1(%arg0: i32) -> (i32, i32) {
    %c0_i32 = arith.constant 0 : i32
    %c0_i32_0 = arith.constant 0 : i32
    %c0_i32_1 = arith.constant 0 : i32
    return %c0_i32, %c0_i32_0 : i32, i32
  }
  func.func @transform_2(%arg0: i32) -> (i32, i32) {
    %c0_i32 = arith.constant 0 : i32
    %c0_i32_0 = arith.constant 0 : i32
    %c0_i32_1 = arith.constant 0 : i32
    return %c0_i32, %c0_i32_0 : i32, i32
  }
  func.func @transform_3(%arg0: i32) -> (i32, i32) {
    %c0_i32 = arith.constant 0 : i32
    %c0_i32_0 = arith.constant 0 : i32
    %c0_i32_1 = arith.constant 0 : i32
    return %c0_i32, %c0_i32_0 : i32, i32
  }
  func.func @transform_4(%arg0: i32) -> (i32, i32, i32) {
    %c0_i32 = arith.constant 0 : i32
    %c0_i32_0 = arith.constant 0 : i32
    %c0_i32_1 = arith.constant 0 : i32
    return %arg0, %c0_i32, %c0_i32_0 : i32, i32, i32
  }
}

</mosaic_0001>

<llo_original>
// kernel: tpu_custom_call.1
$region0: #{tpu_custom_call.1}
  #allocation0 [shape = 'u32[]', space=smem, size = 0x4, offset = 0x4, fixed_abs, tag = 'smem constant byte address 0x4 - core index']
  #allocation1 [shape = 'u32[144,128]{1,0:T(1,128)}', space=vmem, size = 0x12000, scoped, tag = 'internal scratch']
  #allocation2 [shape = 'f32[256,256]{1,0:T(8,128)}', space=vmem, size = 0x40000, scoped, tag = 'scratch operand']
  %s0 = inlined_call_operand.hbm [shape: f32[256,128], index: 0, kind: input, shape index: {}]
  %s1 = inlined_call_operand.hbm [shape: f32[128,128], index: 1, kind: input, shape index: {}]
  %s2 = inlined_call_operand.vmem [shape: f32[40,128], index: 2, kind: input, shape index: {}]
  %s3 = inlined_call_operand.vmem [shape: f32[40,1], index: 3, kind: input, shape index: {}]
  %s4 = inlined_call_operand.hbm [shape: f32[2,40,256], index: 4, kind: output, shape index: {}]
  %s5 = sld [smem:[#allocation0]]
  $region34: #{tpu_custom_call.1} parent=0
    _
  %s7 = ssub.s32 1, %s5
  %s8 = scalar_select 0, %s7, %s5
  $region1: #{tpu_custom_call.1} parent=0
    #allocation3 [shape = 'u8[131072]{0}', space=vmem, size = 0x20000, scoped, tag = 'input window, operand 0, single buffered']
    #allocation4 [shape = 's32[1]{0}', space=sflag, size = 0x4, scoped, tag = 'scoped memory for tpu_custom_call.1']
    #allocation5 [shape = 's32[1]{0}', space=sflag, size = 0x4, scoped, tag = 'scoped memory for tpu_custom_call.1']
    #allocation6 [shape = 'u8[65536]{0}', space=vmem, size = 0x10000, scoped, tag = 'input window, operand 1, single buffered']
    #allocation7 [shape = 's32[1]{0}', space=sflag, size = 0x4, scoped, tag = 'scoped memory for tpu_custom_call.1']
    #allocation8 [shape = 'u8[81920]{0}', space=vmem, size = 0x14000, scoped, tag = 'output window, operand 0, single buffered']
    %9 = vsyncpa [#allocation4], 0
    %10 = vsyncpa [#allocation7], 0
    %11 = vsyncpa [#allocation5], 0
    // Predicated region
    $region2: #{tpu_custom_call.1} parent=1 // pred_check
      _
    $region3: #{tpu_custom_call.1} parent=1 // pred_check_branch
      %13 = sbr.rel (0) target = $region5
    $region4: #{tpu_custom_call.1} parent=1 // pred_region
      %s15 = ssub.s32 4096, 4096
      %16 = vsyncadd [#allocation4], %s15
      %s17 = sshll.u32 [#allocation3], 4
      %s18 = int_to_ptr.vmem [resolvable:$true] %s17
      %23 = dma.hbm_to_vmem [thread:$0]  %s0, 4096, %s18, [#allocation4], 128, 128, 8
    $region5: #{tpu_custom_call.1} parent=1 // pred_fallthru
      _
    // Predicated region
    $region6: #{tpu_custom_call.1} parent=1 // pred_check
      _
    $region7: #{tpu_custom_call.1} parent=1 // pred_check_branch
      %25 = sbr.rel (0) target = $region9
    $region8: #{tpu_custom_call.1} parent=1 // pred_region
      %s27 = ssub.s32 2048, 2048
      %28 = vsyncadd [#allocation7], %s27
      %s29 = sshll.u32 [#allocation6], 4
      %s30 = int_to_ptr.vmem [resolvable:$true] %s29
      %35 = dma.hbm_to_vmem [thread:$0]  %s1, 2048, %s30, [#allocation7], 128, 128, 8
    $region9: #{tpu_custom_call.1} parent=1 // pred_fallthru
      _
    // Predicated region
    $region10: #{tpu_custom_call.1} parent=1 // pred_check
      _
    $region11: #{tpu_custom_call.1} parent=1 // pred_check_branch
      %37 = sbr.rel (0) target = $region13
    $region12: #{tpu_custom_call.1} parent=1 // pred_region
      _
    $region13: #{tpu_custom_call.1} parent=1 // pred_fallthru
      _
    // Predicated region
    $region14: #{tpu_custom_call.1} parent=1 // pred_check
      _
    $region15: #{tpu_custom_call.1} parent=1 // pred_check_branch
      %39 = sbr.rel (0) target = $region17
    $region16: #{tpu_custom_call.1} parent=1 // pred_region
      _
    $region17: #{tpu_custom_call.1} parent=1 // pred_fallthru
      _
    // Predicated region
    $region18: #{tpu_custom_call.1} parent=1 // pred_check
      _
    $region19: #{tpu_custom_call.1} parent=1 // pred_check_branch
      %41 = sbr.rel (0) target = $region21
    $region20: #{tpu_custom_call.1} parent=1 // pred_region
      %42 = dma.done [#allocation4], 4096
    $region21: #{tpu_custom_call.1} parent=1 // pred_fallthru
      _
    // Predicated region
    $region22: #{tpu_custom_call.1} parent=1 // pred_check
      _
    $region23: #{tpu_custom_call.1} parent=1 // pred_check_branch
      %44 = sbr.rel (0) target = $region25
    $region24: #{tpu_custom_call.1} parent=1 // pred_region
      %45 = dma.done [#allocation7], 2048
    $region25: #{tpu_custom_call.1} parent=1 // pred_fallthru
      _
    %v46 = vld [vmem:[#allocation3] sm:$0xff]
    %v47 = vld [vmem:[#allocation3 + $0x8] sm:$0xff]
    %v48 = vld [vmem:[#allocation3 + $0x10] sm:$0xff]
    %v49 = vld [vmem:[#allocation3 + $0x18] sm:$0xff]
    %v50 = vld [vmem:[#allocation3 + $0x20] sm:$0xff]
    %v51 = vld [vmem:[#allocation3 + $0x28] sm:$0xff]
    %v52 = vld [vmem:[#allocation3 + $0x30] sm:$0xff]
    %v53 = vld [vmem:[#allocation3 + $0x38] sm:$0xff]
    %v54 = vld [vmem:[#allocation3 + $0x40] sm:$0xff]
    %v55 = vld [vmem:[#allocation3 + $0x48] sm:$0xff]
    %v56 = vld [vmem:[#allocation3 + $0x50] sm:$0xff]
    %v57 = vld [vmem:[#allocation3 + $0x58] sm:$0xff]
    %v58 = vld [vmem:[#allocation3 + $0x60] sm:$0xff]
    %v59 = vld [vmem:[#allocation3 + $0x68] sm:$0xff]
    %v60 = vld [vmem:[#allocation3 + $0x70] sm:$0xff]
    %v61 = vld [vmem:[#allocation3 + $0x78] sm:$0xff]
    %v62 = vld [vmem:[#allocation3 + $0x80] sm:$0xff]
    %v63 = vld [vmem:[#allocation3 + $0x88] sm:$0xff]
    %v64 = vld [vmem:[#allocation3 + $0x90] sm:$0xff]
    %v65 = vld [vmem:[#allocation3 + $0x98] sm:$0xff]
    %v66 = vld [vmem:[#allocation3 + $0xa0] sm:$0xff]
    %v67 = vld [vmem:[#allocation3 + $0xa8] sm:$0xff]
    %v68 = vld [vmem:[#allocation3 + $0xb0] sm:$0xff]
    %v69 = vld [vmem:[#allocation3 + $0xb8] sm:$0xff]
    %v70 = vld [vmem:[#allocation3 + $0xc0] sm:$0xff]
    %v71 = vld [vmem:[#allocation3 + $0xc8] sm:$0xff]
    %v72 = vld [vmem:[#allocation3 + $0xd0] sm:$0xff]
    %v73 = vld [vmem:[#allocation3 + $0xd8] sm:$0xff]
    %v74 = vld [vmem:[#allocation3 + $0xe0] sm:$0xff]
    %v75 = vld [vmem:[#allocation3 + $0xe8] sm:$0xff]
    %v76 = vld [vmem:[#allocation3 + $0xf0] sm:$0xff]
    %v77 = vld [vmem:[#allocation3 + $0xf8] sm:$0xff]
    %v78 = vld [vmem:[#allocation6] sm:$0xff]
    %v79 = vld [vmem:[#allocation6 + $0x8] sm:$0xff]
    %v80 = vld [vmem:[#allocation6 + $0x10] sm:$0xff]
    %v81 = vld [vmem:[#allocation6 + $0x18] sm:$0xff]
    %v82 = vld [vmem:[#allocation6 + $0x20] sm:$0xff]
    %v83 = vld [vmem:[#allocation6 + $0x28] sm:$0xff]
    %v84 = vld [vmem:[#allocation6 + $0x30] sm:$0xff]
    %v85 = vld [vmem:[#allocation6 + $0x38] sm:$0xff]
    %v86 = vld [vmem:[#allocation6 + $0x40] sm:$0xff]
    %v87 = vld [vmem:[#allocation6 + $0x48] sm:$0xff]
    %v88 = vld [vmem:[#allocation6 + $0x50] sm:$0xff]
    %v89 = vld [vmem:[#allocation6 + $0x58] sm:$0xff]
    %v90 = vld [vmem:[#allocation6 + $0x60] sm:$0xff]
    %v91 = vld [vmem:[#allocation6 + $0x68] sm:$0xff]
    %v92 = vld [vmem:[#allocation6 + $0x70] sm:$0xff]
    %v93 = vld [vmem:[#allocation6 + $0x78] sm:$0xff]
    %94 = vmatprep.subr.mxu0 0.0
    %95 = vmatpush1.msra.mxu0 %v78
    %96 = vmatprep.subr.mxu0 0.0
    %97 = vmatpush1.msra.mxu0 %v79
    %98 = vmatprep.subr.mxu0 0.0
    %99 = vmatpush1.msra.mxu0 %v80
    %100 = vmatprep.subr.mxu0 0.0
    %101 = vmatpush1.msra.mxu0 %v81
    %102 = vmatprep.subr.mxu0 0.0
    %103 = vmatpush1.msra.mxu0 %v82
    %104 = vmatprep.subr.mxu0 0.0
    %105 = vmatpush1.msra.mxu0 %v83
    %106 = vmatprep.subr.mxu0 0.0
    %107 = vmatpush1.msra.mxu0 %v84
    %108 = vmatprep.subr.mxu0 0.0
    %109 = vmatpush1.msra.mxu0 %v85
    %110 = vmatprep.subr.mxu0 0.0
    %111 = vmatpush1.msra.mxu0 %v86
    %112 = vmatprep.subr.mxu0 0.0
    %113 = vmatpush1.msra.mxu0 %v87
    %114 = vmatprep.subr.mxu0 0.0
    %115 = vmatpush1.msra.mxu0 %v88
    %116 = vmatprep.subr.mxu0 0.0
    %117 = vmatpush1.msra.mxu0 %v89
    %118 = vmatprep.subr.mxu0 0.0
    %119 = vmatpush1.msra.mxu0 %v90
    %120 = vmatprep.subr.mxu0 0.0
    %121 = vmatpush1.msra.mxu0 %v91
    %122 = vmatprep.subr.mxu0 0.0
    %123 = vmatpush1.msra.mxu0 %v92
    %124 = vmatprep.subr.mxu0 0.0
    %125 = vmatpush1.msra.mxu0 %v93
    %126 = vmatprep.subr.mxu0 0.0
    %127 = vmatpush1.msra.mxu0 0.0
    %128 = vmatprep.subr.mxu0 0.0
    %129 = vmatpush1.msra.mxu0 0.0
    %130 = vmatprep.subr.mxu0 0.0
    %131 = vmatpush1.msra.mxu0 0.0
    %132 = vmatprep.subr.mxu0 0.0
    %133 = vmatpush1.msra.mxu0 0.0
    %134 = vmatprep.subr.mxu0 0.0
    %135 = vmatpush1.msra.mxu0 0.0
    %136 = vmatprep.subr.mxu0 0.0
    %137 = vmatpush1.msra.mxu0 0.0
    %138 = vmatprep.subr.mxu0 0.0
    %139 = vmatpush1.msra.mxu0 0.0
    %140 = vmatprep.subr.mxu0 0.0
    %141 = vmatpush1.msra.mxu0 0.0
    %142 = vmatprep.subr.mxu0 0.0
    %143 = vmatpush1.msra.mxu0 0.0
    %144 = vmatprep.subr.mxu0 0.0
    %145 = vmatpush1.msra.mxu0 0.0
    %146 = vmatprep.subr.mxu0 0.0
    %147 = vmatpush1.msra.mxu0 0.0
    %148 = vmatprep.subr.mxu0 0.0
    %149 = vmatpush1.msra.mxu0 0.0
    %150 = vmatprep.subr.mxu0 0.0
    %151 = vmatpush1.msra.mxu0 0.0
    %152 = vmatprep.subr.mxu0 0.0
    %153 = vmatpush1.msra.mxu0 0.0
    %154 = vmatprep.subr.mxu0 0.0
    %155 = vmatpush1.msra.mxu0 0.0
    %156 = vmatprep.subr.mxu0 0.0
    %157 = vmatpush1.msra.mxu0 0.0
    %158 = vmatprep.mubr.f32.mxu0 0.0
    %159 = vmatmul.mubr.f32.gmra.mrb[0].mxu0 %v46
    %v160 = vpop.f32.mrb[0].mxu0
    %v161 = vadd.f32 0.0, %v160
    %v162 = vpop.f32.mrb[0].mxu0
    %163 = vmatprep.mubr.f32.mxu0 0.0
    %164 = vmatmul.mubr.f32.gmra.mrb[0].mxu0 %v47
    %v165 = vpop.f32.mrb[0].mxu0
    %v166 = vadd.f32 0.0, %v165
    %v167 = vpop.f32.mrb[0].mxu0
    %168 = vmatprep.mubr.f32.mxu0 0.0
    %169 = vmatmul.mubr.f32.gmra.mrb[0].mxu0 %v48
    %v170 = vpop.f32.mrb[0].mxu0
    %v171 = vadd.f32 0.0, %v170
    %v172 = vpop.f32.mrb[0].mxu0
    %173 = vmatprep.mubr.f32.mxu0 0.0
    %174 = vmatmul.mubr.f32.gmra.mrb[0].mxu0 %v49
    %v175 = vpop.f32.mrb[0].mxu0
    %v176 = vadd.f32 0.0, %v175
    %v177 = vpop.f32.mrb[0].mxu0
    %178 = vmatprep.mubr.f32.mxu0 0.0
    %179 = vmatmul.mubr.f32.gmra.mrb[0].mxu0 %v50
    %v180 = vpop.f32.mrb[0].mxu0
    %v181 = vadd.f32 0.0, %v180
    %v182 = vpop.f32.mrb[0].mxu0
    %183 = vmatprep.mubr.f32.mxu0 0.0
    %184 = vmatmul.mubr.f32.gmra.mrb[0].mxu0 %v51
    %v185 = vpop.f32.mrb[0].mxu0
    %v186 = vadd.f32 0.0, %v185
    %v187 = vpop.f32.mrb[0].mxu0
    %188 = vmatprep.mubr.f32.mxu0 0.0
    %189 = vmatmul.mubr.f32.gmra.mrb[0].mxu0 %v52
    %v190 = vpop.f32.mrb[0].mxu0
    %v191 = vadd.f32 0.0, %v190
    %v192 = vpop.f32.mrb[0].mxu0
    %193 = vmatprep.mubr.f32.mxu0 0.0
    %194 = vmatmul.mubr.f32.gmra.mrb[0].mxu0 %v53
    %v195 = vpop.f32.mrb[0].mxu0
    %v196 = vadd.f32 0.0, %v195
    %v197 = vpop.f32.mrb[0].mxu0
    %198 = vmatprep.mubr.f32.mxu0 0.0
    %199 = vmatmul.mubr.f32.gmra.mrb[0].mxu0 %v54
    %v200 = vpop.f32.mrb[0].mxu0
    %v201 = vadd.f32 0.0, %v200
    %v202 = vpop.f32.mrb[0].mxu0
    %203 = vmatprep.mubr.f32.mxu0 0.0
    %204 = vmatmul.mubr.f32.gmra.mrb[0].mxu0 %v55
    %v205 = vpop.f32.mrb[0].mxu0
    %v206 = vadd.f32 0.0, %v205
    %v207 = vpop.f32.mrb[0].mxu0
    %208 = vmatprep.mubr.f32.mxu0 0.0
    %209 = vmatmul.mubr.f32.gmra.mrb[0].mxu0 %v56
    %v210 = vpop.f32.mrb[0].mxu0
    %v211 = vadd.f32 0.0, %v210
    %v212 = vpop.f32.mrb[0].mxu0
    %213 = vmatprep.mubr.f32.mxu0 0.0
    %214 = vmatmul.mubr.f32.gmra.mrb[0].mxu0 %v57
    %v215 = vpop.f32.mrb[0].mxu0
    %v216 = vadd.f32 0.0, %v215
    %v217 = vpop.f32.mrb[0].mxu0
    %218 = vmatprep.mubr.f32.mxu0 0.0
    %219 = vmatmul.mubr.f32.gmra.mrb[0].mxu0 %v58
    %v220 = vpop.f32.mrb[0].mxu0
    %v221 = vadd.f32 0.0, %v220
    %v222 = vpop.f32.mrb[0].mxu0
    %223 = vmatprep.mubr.f32.mxu0 0.0
    %224 = vmatmul.mubr.f32.gmra.mrb[0].mxu0 %v59
    %v225 = vpop.f32.mrb[0].mxu0
    %v226 = vadd.f32 0.0, %v225
    %v227 = vpop.f32.mrb[0].mxu0
    %228 = vmatprep.mubr.f32.mxu0 0.0
    %229 = vmatmul.mubr.f32.gmra.mrb[0].mxu0 %v60
    %v230 = vpop.f32.mrb[0].mxu0
    %v231 = vadd.f32 0.0, %v230
    %v232 = vpop.f32.mrb[0].mxu0
    %233 = vmatprep.mubr.f32.mxu0 0.0
    %234 = vmatmul.mubr.f32.gmra.mrb[0].mxu0 %v61
    %v235 = vpop.f32.mrb[0].mxu0
    %v236 = vadd.f32 0.0, %v235
    %v237 = vpop.f32.mrb[0].mxu0
    %238 = vmatprep.mubr.f32.mxu0 0.0
    %239 = vmatmul.mubr.f32.gmra.mrb[0].mxu0 %v62
    %v240 = vpop.f32.mrb[0].mxu0
    %v241 = vadd.f32 0.0, %v240
    %v242 = vpop.f32.mrb[0].mxu0
    %243 = vmatprep.mubr.f32.mxu0 0.0
    %244 = vmatmul.mubr.f32.gmra.mrb[0].mxu0 %v63
    %v245 = vpop.f32.mrb[0].mxu0
    %v246 = vadd.f32 0.0, %v245
    %v247 = vpop.f32.mrb[0].mxu0
    %248 = vmatprep.mubr.f32.mxu0 0.0
    %249 = vmatmul.mubr.f32.gmra.mrb[0].mxu0 %v64
    %v250 = vpop.f32.mrb[0].mxu0
    %v251 = vadd.f32 0.0, %v250
    %v252 = vpop.f32.mrb[0].mxu0
    %253 = vmatprep.mubr.f32.mxu0 0.0
    %254 = vmatmul.mubr.f32.gmra.mrb[0].mxu0 %v65
    %v255 = vpop.f32.mrb[0].mxu0
    %v256 = vadd.f32 0.0, %v255
    %v257 = vpop.f32.mrb[0].mxu0
    %258 = vmatprep.mubr.f32.mxu0 0.0
    %259 = vmatmul.mubr.f32.gmra.mrb[0].mxu0 %v66
    %v260 = vpop.f32.mrb[0].mxu0
    %v261 = vadd.f32 0.0, %v260
    %v262 = vpop.f32.mrb[0].mxu0
    %263 = vmatprep.mubr.f32.mxu0 0.0
    %264 = vmatmul.mubr.f32.gmra.mrb[0].mxu0 %v67
    %v265 = vpop.f32.mrb[0].mxu0
    %v266 = vadd.f32 0.0, %v265
    %v267 = vpop.f32.mrb[0].mxu0
    %268 = vmatprep.mubr.f32.mxu0 0.0
    %269 = vmatmul.mubr.f32.gmra.mrb[0].mxu0 %v68
    %v270 = vpop.f32.mrb[0].mxu0
    %v271 = vadd.f32 0.0, %v270
    %v272 = vpop.f32.mrb[0].mxu0
    %273 = vmatprep.mubr.f32.mxu0 0.0
    %274 = vmatmul.mubr.f32.gmra.mrb[0].mxu0 %v69
    %v275 = vpop.f32.mrb[0].mxu0
    %v276 = vadd.f32 0.0, %v275
    %v277 = vpop.f32.mrb[0].mxu0
    %278 = vmatprep.mubr.f32.mxu0 0.0
    %279 = vmatmul.mubr.f32.gmra.mrb[0].mxu0 %v70
    %v280 = vpop.f32.mrb[0].mxu0
    %v281 = vadd.f32 0.0, %v280
    %v282 = vpop.f32.mrb[0].mxu0
    %283 = vmatprep.mubr.f32.mxu0 0.0
    %284 = vmatmul.mubr.f32.gmra.mrb[0].mxu0 %v71
    %v285 = vpop.f32.mrb[0].mxu0
    %v286 = vadd.f32 0.0, %v285
    %v287 = vpop.f32.mrb[0].mxu0
    %288 = vmatprep.mubr.f32.mxu0 0.0
    %289 = vmatmul.mubr.f32.gmra.mrb[0].mxu0 %v72
    %v290 = vpop.f32.mrb[0].mxu0
    %v291 = vadd.f32 0.0, %v290
    %v292 = vpop.f32.mrb[0].mxu0
    %293 = vmatprep.mubr.f32.mxu0 0.0
    %294 = vmatmul.mubr.f32.gmra.mrb[0].mxu0 %v73
    %v295 = vpop.f32.mrb[0].mxu0
    %v296 = vadd.f32 0.0, %v295
    %v297 = vpop.f32.mrb[0].mxu0
    %298 = vmatprep.mubr.f32.mxu0 0.0
    %299 = vmatmul.mubr.f32.gmra.mrb[0].mxu0 %v74
    %v300 = vpop.f32.mrb[0].mxu0
    %v301 = vadd.f32 0.0, %v300
    %v302 = vpop.f32.mrb[0].mxu0
    %303 = vmatprep.mubr.f32.mxu0 0.0
    %304 = vmatmul.mubr.f32.gmra.mrb[0].mxu0 %v75
    %v305 = vpop.f32.mrb[0].mxu0
    %v306 = vadd.f32 0.0, %v305
    %v307 = vpop.f32.mrb[0].mxu0
    %308 = vmatprep.mubr.f32.mxu0 0.0
    %309 = vmatmul.mubr.f32.gmra.mrb[0].mxu0 %v76
    %v310 = vpop.f32.mrb[0].mxu0
    %v311 = vadd.f32 0.0, %v310
    %v312 = vpop.f32.mrb[0].mxu0
    %313 = vmatprep.mubr.f32.mxu0 0.0
    %314 = vmatmul.mubr.f32.gmra.mrb[0].mxu0 %v77
    %v315 = vpop.f32.mrb[0].mxu0
    %v316 = vadd.f32 0.0, %v315
    %v317 = vpop.f32.mrb[0].mxu0
    %318 = vdwg.mxu0
    %v319 = vsub.f32 %v161, 1.0
    %v320 = vsub.f32 %v166, 1.0
    %v321 = vsub.f32 %v171, 1.0
    %v322 = vsub.f32 %v176, 1.0
    %v323 = vsub.f32 %v181, 1.0
    %v324 = vsub.f32 %v186, 1.0
    %v325 = vsub.f32 %v191, 1.0
    %v326 = vsub.f32 %v196, 1.0
    %v327 = vsub.f32 %v201, 1.0
    %v328 = vsub.f32 %v206, 1.0
    %v329 = vsub.f32 %v211, 1.0
    %v330 = vsub.f32 %v216, 1.0
    %v331 = vsub.f32 %v221, 1.0
    %v332 = vsub.f32 %v226, 1.0
    %v333 = vsub.f32 %v231, 1.0
    %v334 = vsub.f32 %v236, 1.0
    %v335 = vsub.f32 %v241, 1.0
    %v336 = vsub.f32 %v246, 1.0
    %v337 = vsub.f32 %v251, 1.0
    %v338 = vsub.f32 %v256, 1.0
    %v339 = vsub.f32 %v261, 1.0
    %v340 = vsub.f32 %v266, 1.0
    %v341 = vsub.f32 %v271, 1.0
    %v342 = vsub.f32 %v276, 1.0
    %v343 = vsub.f32 %v281, 1.0
    %v344 = vsub.f32 %v286, 1.0
    %v345 = vsub.f32 %v291, 1.0
    %v346 = vsub.f32 %v296, 1.0
    %v347 = vsub.f32 %v301, 1.0
    %v348 = vsub.f32 %v306, 1.0
    %v349 = vsub.f32 %v311, 1.0
    %v350 = vsub.f32 %v316, 1.0
    %v351 = vmax.f32 %v319, 0.0
    %v352 = vmax.f32 %v320, 0.0
    %v353 = vmax.f32 %v321, 0.0
    %v354 = vmax.f32 %v322, 0.0
    %v355 = vmax.f32 %v323, 0.0
    %v356 = vmax.f32 %v324, 0.0
    %v357 = vmax.f32 %v325, 0.0
    %v358 = vmax.f32 %v326, 0.0
    %v359 = vmax.f32 %v327, 0.0
    %v360 = vmax.f32 %v328, 0.0
    %v361 = vmax.f32 %v329, 0.0
    %v362 = vmax.f32 %v330, 0.0
    %v363 = vmax.f32 %v331, 0.0
    %v364 = vmax.f32 %v332, 0.0
    %v365 = vmax.f32 %v333, 0.0
    %v366 = vmax.f32 %v334, 0.0
    %v367 = vmax.f32 %v335, 0.0
    %v368 = vmax.f32 %v336, 0.0
    %v369 = vmax.f32 %v337, 0.0
    %v370 = vmax.f32 %v338, 0.0
    %v371 = vmax.f32 %v339, 0.0
    %v372 = vmax.f32 %v340, 0.0
    %v373 = vmax.f32 %v341, 0.0
    %v374 = vmax.f32 %v342, 0.0
    %v375 = vmax.f32 %v343, 0.0
    %v376 = vmax.f32 %v344, 0.0
    %v377 = vmax.f32 %v345, 0.0
    %v378 = vmax.f32 %v346, 0.0
    %v379 = vmax.f32 %v347, 0.0
    %v380 = vmax.f32 %v348, 0.0
    %v381 = vmax.f32 %v349, 0.0
    %v382 = vmax.f32 %v350, 0.0
    %383 = vst [vmem:[#allocation2] sm:$0xff] %v351
    %384 = vst [vmem:[#allocation2 + $0x10] sm:$0xff] %v352
    %385 = vst [vmem:[#allocation2 + $0x20] sm:$0xff] %v353
    %386 = vst [vmem:[#allocation2 + $0x30] sm:$0xff] %v354
    %387 = vst [vmem:[#allocation2 + $0x40] sm:$0xff] %v355
    %388 = vst [vmem:[#allocation2 + $0x50] sm:$0xff] %v356
    %389 = vst [vmem:[#allocation2 + $0x60] sm:$0xff] %v357
    %390 = vst [vmem:[#allocation2 + $0x70] sm:$0xff] %v358
    %391 = vst [vmem:[#allocation2 + $0x80] sm:$0xff] %v359
    %392 = vst [vmem:[#allocation2 + $0x90] sm:$0xff] %v360
    %393 = vst [vmem:[#allocation2 + $0xa0] sm:$0xff] %v361
    %394 = vst [vmem:[#allocation2 + $0xb0] sm:$0xff] %v362
    %395 = vst [vmem:[#allocation2 + $0xc0] sm:$0xff] %v363
    %396 = vst [vmem:[#allocation2 + $0xd0] sm:$0xff] %v364
    %397 = vst [vmem:[#allocation2 + $0xe0] sm:$0xff] %v365
    %398 = vst [vmem:[#allocation2 + $0xf0] sm:$0xff] %v366
    %399 = vst [vmem:[#allocation2 + $0x100] sm:$0xff] %v367
    %400 = vst [vmem:[#allocation2 + $0x110] sm:$0xff] %v368
    %401 = vst [vmem:[#allocation2 + $0x120] sm:$0xff] %v369
    %402 = vst [vmem:[#allocation2 + $0x130] sm:$0xff] %v370
    %403 = vst [vmem:[#allocation2 + $0x140] sm:$0xff] %v371
    %404 = vst [vmem:[#allocation2 + $0x150] sm:$0xff] %v372
    %405 = vst [vmem:[#allocation2 + $0x160] sm:$0xff] %v373
    %406 = vst [vmem:[#allocation2 + $0x170] sm:$0xff] %v374
    %407 = vst [vmem:[#allocation2 + $0x180] sm:$0xff] %v375
    %408 = vst [vmem:[#allocation2 + $0x190] sm:$0xff] %v376
    %409 = vst [vmem:[#allocation2 + $0x1a0] sm:$0xff] %v377
    %410 = vst [vmem:[#allocation2 + $0x1b0] sm:$0xff] %v378
    %411 = vst [vmem:[#allocation2 + $0x1c0] sm:$0xff] %v379
    %412 = vst [vmem:[#allocation2 + $0x1d0] sm:$0xff] %v380
    %413 = vst [vmem:[#allocation2 + $0x1e0] sm:$0xff] %v381
    %414 = vst [vmem:[#allocation2 + $0x1f0] sm:$0xff] %v382
    %v415 = vsub.f32 0.0, %v161
    %v416 = vsub.f32 0.0, %v166
    %v417 = vsub.f32 0.0, %v171
    %v418 = vsub.f32 0.0, %v176
    %v419 = vsub.f32 0.0, %v181
    %v420 = vsub.f32 0.0, %v186
    %v421 = vsub.f32 0.0, %v191
    %v422 = vsub.f32 0.0, %v196
    %v423 = vsub.f32 0.0, %v201
    %v424 = vsub.f32 0.0, %v206
    %v425 = vsub.f32 0.0, %v211
    %v426 = vsub.f32 0.0, %v216
    %v427 = vsub.f32 0.0, %v221
    %v428 = vsub.f32 0.0, %v226
    %v429 = vsub.f32 0.0, %v231
    %v430 = vsub.f32 0.0, %v236
    %v431 = vsub.f32 0.0, %v241
    %v432 = vsub.f32 0.0, %v246
    %v433 = vsub.f32 0.0, %v251
    %v434 = vsub.f32 0.0, %v256
    %v435 = vsub.f32 0.0, %v261
    %v436 = vsub.f32 0.0, %v266
    %v437 = vsub.f32 0.0, %v271
    %v438 = vsub.f32 0.0, %v276
    %v439 = vsub.f32 0.0, %v281
    %v440 = vsub.f32 0.0, %v286
    %v441 = vsub.f32 0.0, %v291
    %v442 = vsub.f32 0.0, %v296
    %v443 = vsub.f32 0.0, %v301
    %v444 = vsub.f32 0.0, %v306
    %v445 = vsub.f32 0.0, %v311
    %v446 = vsub.f32 0.0, %v316
    %v447 = vsub.f32 %v415, 1.0
    %v448 = vsub.f32 %v416, 1.0
    %v449 = vsub.f32 %v417, 1.0
    %v450 = vsub.f32 %v418, 1.0
    %v451 = vsub.f32 %v419, 1.0
    %v452 = vsub.f32 %v420, 1.0
    %v453 = vsub.f32 %v421, 1.0
    %v454 = vsub.f32 %v422, 1.0
    %v455 = vsub.f32 %v423, 1.0
    %v456 = vsub.f32 %v424, 1.0
    %v457 = vsub.f32 %v425, 1.0
    %v458 = vsub.f32 %v426, 1.0
    %v459 = vsub.f32 %v427, 1.0
    %v460 = vsub.f32 %v428, 1.0
    %v461 = vsub.f32 %v429, 1.0
    %v462 = vsub.f32 %v430, 1.0
    %v463 = vsub.f32 %v431, 1.0
    %v464 = vsub.f32 %v432, 1.0
    %v465 = vsub.f32 %v433, 1.0
    %v466 = vsub.f32 %v434, 1.0
    %v467 = vsub.f32 %v435, 1.0
    %v468 = vsub.f32 %v436, 1.0
    %v469 = vsub.f32 %v437, 1.0
    %v470 = vsub.f32 %v438, 1.0
    %v471 = vsub.f32 %v439, 1.0
    %v472 = vsub.f32 %v440, 1.0
    %v473 = vsub.f32 %v441, 1.0
    %v474 = vsub.f32 %v442, 1.0
    %v475 = vsub.f32 %v443, 1.0
    %v476 = vsub.f32 %v444, 1.0
    %v477 = vsub.f32 %v445, 1.0
    %v478 = vsub.f32 %v446, 1.0
    %v479 = vmax.f32 %v447, 0.0
    %v480 = vmax.f32 %v448, 0.0
    %v481 = vmax.f32 %v449, 0.0
    %v482 = vmax.f32 %v450, 0.0
    %v483 = vmax.f32 %v451, 0.0
    %v484 = vmax.f32 %v452, 0.0
    %v485 = vmax.f32 %v453, 0.0
    %v486 = vmax.f32 %v454, 0.0
    %v487 = vmax.f32 %v455, 0.0
    %v488 = vmax.f32 %v456, 0.0
    %v489 = vmax.f32 %v457, 0.0
    %v490 = vmax.f32 %v458, 0.0
    %v491 = vmax.f32 %v459, 0.0
    %v492 = vmax.f32 %v460, 0.0
    %v493 = vmax.f32 %v461, 0.0
    %v494 = vmax.f32 %v462, 0.0
    %v495 = vmax.f32 %v463, 0.0
    %v496 = vmax.f32 %v464, 0.0
    %v497 = vmax.f32 %v465, 0.0
    %v498 = vmax.f32 %v466, 0.0
    %v499 = vmax.f32 %v467, 0.0
    %v500 = vmax.f32 %v468, 0.0
    %v501 = vmax.f32 %v469, 0.0
    %v502 = vmax.f32 %v470, 0.0
    %v503 = vmax.f32 %v471, 0.0
    %v504 = vmax.f32 %v472, 0.0
    %v505 = vmax.f32 %v473, 0.0
    %v506 = vmax.f32 %v474, 0.0
    %v507 = vmax.f32 %v475, 0.0
    %v508 = vmax.f32 %v476, 0.0
    %v509 = vmax.f32 %v477, 0.0
    %v510 = vmax.f32 %v478, 0.0
    %511 = vst [vmem:[#allocation2 + $0x8] sm:$0xff] %v479
    %512 = vst [vmem:[#allocation2 + $0x18] sm:$0xff] %v480
    %513 = vst [vmem:[#allocation2 + $0x28] sm:$0xff] %v481
    %514 = vst [vmem:[#allocation2 + $0x38] sm:$0xff] %v482
    %515 = vst [vmem:[#allocation2 + $0x48] sm:$0xff] %v483
    %516 = vst [vmem:[#allocation2 + $0x58] sm:$0xff] %v484
    %517 = vst [vmem:[#allocation2 + $0x68] sm:$0xff] %v485
    %518 = vst [vmem:[#allocation2 + $0x78] sm:$0xff] %v486
    %519 = vst [vmem:[#allocation2 + $0x88] sm:$0xff] %v487
    %520 = vst [vmem:[#allocation2 + $0x98] sm:$0xff] %v488
    %521 = vst [vmem:[#allocation2 + $0xa8] sm:$0xff] %v489
    %522 = vst [vmem:[#allocation2 + $0xb8] sm:$0xff] %v490
    %523 = vst [vmem:[#allocation2 + $0xc8] sm:$0xff] %v491
    %524 = vst [vmem:[#allocation2 + $0xd8] sm:$0xff] %v492
    %525 = vst [vmem:[#allocation2 + $0xe8] sm:$0xff] %v493
    %526 = vst [vmem:[#allocation2 + $0xf8] sm:$0xff] %v494
    %527 = vst [vmem:[#allocation2 + $0x108] sm:$0xff] %v495
    %528 = vst [vmem:[#allocation2 + $0x118] sm:$0xff] %v496
    %529 = vst [vmem:[#allocation2 + $0x128] sm:$0xff] %v497
    %530 = vst [vmem:[#allocation2 + $0x138] sm:$0xff] %v498
    %531 = vst [vmem:[#allocation2 + $0x148] sm:$0xff] %v499
    %532 = vst [vmem:[#allocation2 + $0x158] sm:$0xff] %v500
    %533 = vst [vmem:[#allocation2 + $0x168] sm:$0xff] %v501
    %534 = vst [vmem:[#allocation2 + $0x178] sm:$0xff] %v502
    %535 = vst [vmem:[#allocation2 + $0x188] sm:$0xff] %v503
    %536 = vst [vmem:[#allocation2 + $0x198] sm:$0xff] %v504
    %537 = vst [vmem:[#allocation2 + $0x1a8] sm:$0xff] %v505
    %538 = vst [vmem:[#allocation2 + $0x1b8] sm:$0xff] %v506
    %539 = vst [vmem:[#allocation2 + $0x1c8] sm:$0xff] %v507
    %540 = vst [vmem:[#allocation2 + $0x1d8] sm:$0xff] %v508
    %541 = vst [vmem:[#allocation2 + $0x1e8] sm:$0xff] %v509
    %542 = vst [vmem:[#allocation2 + $0x1f8] sm:$0xff] %v510
    %v543 = vld [vmem:[%s2] sm:$0xff]
    %v544 = vld [vmem:[%s2 + $0x8] sm:$0xff]
    %v545 = vld [vmem:[%s2 + $0x10] sm:$0xff]
    %v546 = vld [vmem:[%s2 + $0x18] sm:$0xff]
    %v547 = vld [vmem:[%s2 + $0x20] sm:$0xff]
    %v548 = vld [vmem:[%s3] sm:$0xff]
    %v549 = vld [vmem:[%s3 + $0x8] sm:$0xff]
    %v550 = vld [vmem:[%s3 + $0x10] sm:$0xff]
    %v551 = vld [vmem:[%s3 + $0x18] sm:$0xff]
    %v552 = vld [vmem:[%s3 + $0x20] sm:$0xff]
    %v553 = vld [vmem:[#allocation2] sm:$0xff]
    %v554 = vld [vmem:[#allocation2 + $0x8] sm:$0xff]
    %v555 = vld [vmem:[#allocation2 + $0x10] sm:$0xff]
    %v556 = vld [vmem:[#allocation2 + $0x18] sm:$0xff]
    %v557 = vld [vmem:[#allocation2 + $0x20] sm:$0xff]
    %v558 = vld [vmem:[#allocation2 + $0x28] sm:$0xff]
    %v559 = vld [vmem:[#allocation2 + $0x30] sm:$0xff]
    %v560 = vld [vmem:[#allocation2 + $0x38] sm:$0xff]
    %v561 = vld [vmem:[#allocation2 + $0x40] sm:$0xff]
    %v562 = vld [vmem:[#allocation2 + $0x48] sm:$0xff]
    %v563 = vld [vmem:[#allocation2 + $0x50] sm:$0xff]
    %v564 = vld [vmem:[#allocation2 + $0x58] sm:$0xff]
    %v565 = vld [vmem:[#allocation2 + $0x60] sm:$0xff]
    %v566 = vld [vmem:[#allocation2 + $0x68] sm:$0xff]
    %v567 = vld [vmem:[#allocation2 + $0x70] sm:$0xff]
    %v568 = vld [vmem:[#allocation2 + $0x78] sm:$0xff]
    %v569 = vld [vmem:[#allocation2 + $0x80] sm:$0xff]
    %v570 = vld [vmem:[#allocation2 + $0x88] sm:$0xff]
    %v571 = vld [vmem:[#allocation2 + $0x90] sm:$0xff]
    %v572 = vld [vmem:[#allocation2 + $0x98] sm:$0xff]
    %v573 = vld [vmem:[#allocation2 + $0xa0] sm:$0xff]
    %v574 = vld [vmem:[#allocation2 + $0xa8] sm:$0xff]
    %v575 = vld [vmem:[#allocation2 + $0xb0] sm:$0xff]
    %v576 = vld [vmem:[#allocation2 + $0xb8] sm:$0xff]
    %v577 = vld [vmem:[#allocation2 + $0xc0] sm:$0xff]
    %v578 = vld [vmem:[#allocation2 + $0xc8] sm:$0xff]
    %v579 = vld [vmem:[#allocation2 + $0xd0] sm:$0xff]
    %v580 = vld [vmem:[#allocation2 + $0xd8] sm:$0xff]
    %v581 = vld [vmem:[#allocation2 + $0xe0] sm:$0xff]
    %v582 = vld [vmem:[#allocation2 + $0xe8] sm:$0xff]
    %v583 = vld [vmem:[#allocation2 + $0xf0] sm:$0xff]
    %v584 = vld [vmem:[#allocation2 + $0xf8] sm:$0xff]
    %585 = vmatprep.subr.mxu0 %v554
    %586 = vmatpush1.msra.mxu0 %v553
    %587 = vmatprep.subr.mxu0 %v556
    %588 = vmatpush1.msra.mxu0 %v555
    %589 = vmatprep.subr.mxu0 %v558
    %590 = vmatpush1.msra.mxu0 %v557
    %591 = vmatprep.subr.mxu0 %v560
    %592 = vmatpush1.msra.mxu0 %v559
    %593 = vmatprep.subr.mxu0 %v562
    %594 = vmatpush1.msra.mxu0 %v561
    %595 = vmatprep.subr.mxu0 %v564
    %596 = vmatpush1.msra.mxu0 %v563
    %597 = vmatprep.subr.mxu0 %v566
    %598 = vmatpush1.msra.mxu0 %v565
    %599 = vmatprep.subr.mxu0 %v568
    %600 = vmatpush1.msra.mxu0 %v567
    %601 = vmatprep.subr.mxu0 %v570
    %602 = vmatpush1.msra.mxu0 %v569
    %603 = vmatprep.subr.mxu0 %v572
    %604 = vmatpush1.msra.mxu0 %v571
    %605 = vmatprep.subr.mxu0 %v574
    %606 = vmatpush1.msra.mxu0 %v573
    %607 = vmatprep.subr.mxu0 %v576
    %608 = vmatpush1.msra.mxu0 %v575
    %609 = vmatprep.subr.mxu0 %v578
    %610 = vmatpush1.msra.mxu0 %v577
    %611 = vmatprep.subr.mxu0 %v580
    %612 = vmatpush1.msra.mxu0 %v579
    %613 = vmatprep.subr.mxu0 %v582
    %614 = vmatpush1.msra.mxu0 %v581
    %615 = vmatprep.subr.mxu0 %v584
    %616 = vmatpush1.msra.mxu0 %v583
    %617 = vmatprep.subr.mxu0 0.0
    %618 = vmatpush1.msra.mxu0 0.0
    %619 = vmatprep.subr.mxu0 0.0
    %620 = vmatpush1.msra.mxu0 0.0
    %621 = vmatprep.subr.mxu0 0.0
    %622 = vmatpush1.msra.mxu0 0.0
    %623 = vmatprep.subr.mxu0 0.0
    %624 = vmatpush1.msra.mxu0 0.0
    %625 = vmatprep.subr.mxu0 0.0
    %626 = vmatpush1.msra.mxu0 0.0
    %627 = vmatprep.subr.mxu0 0.0
    %628 = vmatpush1.msra.mxu0 0.0
    %629 = vmatprep.subr.mxu0 0.0
    %630 = vmatpush1.msra.mxu0 0.0
    %631 = vmatprep.subr.mxu0 0.0
    %632 = vmatpush1.msra.mxu0 0.0
    %633 = vmatprep.subr.mxu0 0.0
    %634 = vmatpush1.msra.mxu0 0.0
    %635 = vmatprep.subr.mxu0 0.0
    %636 = vmatpush1.msra.mxu0 0.0
    %637 = vmatprep.subr.mxu0 0.0
    %638 = vmatpush1.msra.mxu0 0.0
    %639 = vmatprep.subr.mxu0 0.0
    %640 = vmatpush1.msra.mxu0 0.0
    %641 = vmatprep.subr.mxu0 0.0
    %642 = vmatpush1.msra.mxu0 0.0
    %643 = vmatprep.subr.mxu0 0.0
    %644 = vmatpush1.msra.mxu0 0.0
    %645 = vmatprep.subr.mxu0 0.0
    %646 = vmatpush1.msra.mxu0 0.0
    %647 = vmatprep.subr.mxu0 0.0
    %648 = vmatpush1.msra.mxu0 0.0
    %649 = vmatprep.mubr.f32.mxu0 0.0
    %650 = vmatmul.mubr.f32.gmra.mrb[0].mxu0 %v543
    %v651 = vpop.f32.mrb[0].mxu0
    %v652 = vadd.f32 0.0, %v651
    %v653 = vpop.f32.mrb[0].mxu0
    %v654 = vadd.f32 0.0, %v653
    %655 = vmatprep.mubr.f32.mxu0 0.0
    %656 = vmatmul.mubr.f32.gmra.mrb[0].mxu0 %v544
    %v657 = vpop.f32.mrb[0].mxu0
    %v658 = vadd.f32 0.0, %v657
    %v659 = vpop.f32.mrb[0].mxu0
    %v660 = vadd.f32 0.0, %v659
    %661 = vmatprep.mubr.f32.mxu0 0.0
    %662 = vmatmul.mubr.f32.gmra.mrb[0].mxu0 %v545
    %v663 = vpop.f32.mrb[0].mxu0
    %v664 = vadd.f32 0.0, %v663
    %v665 = vpop.f32.mrb[0].mxu0
    %v666 = vadd.f32 0.0, %v665
    %667 = vmatprep.mubr.f32.mxu0 0.0
    %668 = vmatmul.mubr.f32.gmra.mrb[0].mxu0 %v546
    %v669 = vpop.f32.mrb[0].mxu0
    %v670 = vadd.f32 0.0, %v669
    %v671 = vpop.f32.mrb[0].mxu0
    %v672 = vadd.f32 0.0, %v671
    %673 = vmatprep.mubr.f32.mxu0 0.0
    %674 = vmatmul.mubr.f32.gmra.mrb[0].mxu0 %v547
    %v675 = vpop.f32.mrb[0].mxu0
    %v676 = vadd.f32 0.0, %v675
    %v677 = vpop.f32.mrb[0].mxu0
    %v678 = vadd.f32 0.0, %v677
    %679 = vdwg.mxu0
    %681 = vset.pattern.permute.xlu0 0
    %682 = vperm.xlu0 %681, %v548
    %v683 = vpop.permute.xlu0 %682
    %686 = vset.pattern.permute.xlu0 0
    %687 = vperm.xlu0 %686, %v549
    %v688 = vpop.permute.xlu0 %687
    %691 = vset.pattern.permute.xlu0 0
    %692 = vperm.xlu0 %691, %v550
    %v693 = vpop.permute.xlu0 %692
    %696 = vset.pattern.permute.xlu0 0
    %697 = vperm.xlu0 %696, %v551
    %v698 = vpop.permute.xlu0 %697
    %701 = vset.pattern.permute.xlu0 0
    %702 = vperm.xlu0 %701, %v552
    %v703 = vpop.permute.xlu0 %702
    %v705 = vmul.f32 %v652, %v683
    %v706 = vmul.f32 %v654, %v683
    %v707 = vmul.f32 %v658, %v688
    %v708 = vmul.f32 %v660, %v688
    %v709 = vmul.f32 %v664, %v693
    %v710 = vmul.f32 %v666, %v693
    %v711 = vmul.f32 %v670, %v698
    %v712 = vmul.f32 %v672, %v698
    %v713 = vmul.f32 %v676, %v703
    %v714 = vmul.f32 %v678, %v703
    %715 = vst [vmem:[#allocation8] sm:$0xff] %v705
    %716 = vst [vmem:[#allocation8 + $0x8] sm:$0xff] %v706
    %717 = vst [vmem:[#allocation8 + $0x10] sm:$0xff] %v707
    %718 = vst [vmem:[#allocation8 + $0x18] sm:$0xff] %v708
    %719 = vst [vmem:[#allocation8 + $0x20] sm:$0xff] %v709
    %720 = vst [vmem:[#allocation8 + $0x28] sm:$0xff] %v710
    %721 = vst [vmem:[#allocation8 + $0x30] sm:$0xff] %v711
    %722 = vst [vmem:[#allocation8 + $0x38] sm:$0xff] %v712
    %723 = vst [vmem:[#allocation8 + $0x40] sm:$0xff] %v713
    %724 = vst [vmem:[#allocation8 + $0x48] sm:$0xff] %v714
    %v725 = vld [vmem:[#allocation2 + $0x100] sm:$0xff]
    %v726 = vld [vmem:[#allocation2 + $0x108] sm:$0xff]
    %v727 = vld [vmem:[#allocation2 + $0x110] sm:$0xff]
    %v728 = vld [vmem:[#allocation2 + $0x118] sm:$0xff]
    %v729 = vld [vmem:[#allocation2 + $0x120] sm:$0xff]
    %v730 = vld [vmem:[#allocation2 + $0x128] sm:$0xff]
    %v731 = vld [vmem:[#allocation2 + $0x130] sm:$0xff]
    %v732 = vld [vmem:[#allocation2 + $0x138] sm:$0xff]
    %v733 = vld [vmem:[#allocation2 + $0x140] sm:$0xff]
    %v734 = vld [vmem:[#allocation2 + $0x148] sm:$0xff]
    %v735 = vld [vmem:[#allocation2 + $0x150] sm:$0xff]
    %v736 = vld [vmem:[#allocation2 + $0x158] sm:$0xff]
    %v737 = vld [vmem:[#allocation2 + $0x160] sm:$0xff]
    %v738 = vld [vmem:[#allocation2 + $0x168] sm:$0xff]
    %v739 = vld [vmem:[#allocation2 + $0x170] sm:$0xff]
    %v740 = vld [vmem:[#allocation2 + $0x178] sm:$0xff]
    %v741 = vld [vmem:[#allocation2 + $0x180] sm:$0xff]
    %v742 = vld [vmem:[#allocation2 + $0x188] sm:$0xff]
    %v743 = vld [vmem:[#allocation2 + $0x190] sm:$0xff]
    %v744 = vld [vmem:[#allocation2 + $0x198] sm:$0xff]
    %v745 = vld [vmem:[#allocation2 + $0x1a0] sm:$0xff]
    %v746 = vld [vmem:[#allocation2 + $0x1a8] sm:$0xff]
    %v747 = vld [vmem:[#allocation2 + $0x1b0] sm:$0xff]
    %v748 = vld [vmem:[#allocation2 + $0x1b8] sm:$0xff]
    %v749 = vld [vmem:[#allocation2 + $0x1c0] sm:$0xff]
    %v750 = vld [vmem:[#allocation2 + $0x1c8] sm:$0xff]
    %v751 = vld [vmem:[#allocation2 + $0x1d0] sm:$0xff]
    %v752 = vld [vmem:[#allocation2 + $0x1d8] sm:$0xff]
    %v753 = vld [vmem:[#allocation2 + $0x1e0] sm:$0xff]
    %v754 = vld [vmem:[#allocation2 + $0x1e8] sm:$0xff]
    %v755 = vld [vmem:[#allocation2 + $0x1f0] sm:$0xff]
    %v756 = vld [vmem:[#allocation2 + $0x1f8] sm:$0xff]
    %757 = vmatprep.subr.mxu0 %v726
    %758 = vmatpush1.msra.mxu0 %v725
    %759 = vmatprep.subr.mxu0 %v728
    %760 = vmatpush1.msra.mxu0 %v727
    %761 = vmatprep.subr.mxu0 %v730
    %762 = vmatpush1.msra.mxu0 %v729
    %763 = vmatprep.subr.mxu0 %v732
    %764 = vmatpush1.msra.mxu0 %v731
    %765 = vmatprep.subr.mxu0 %v734
    %766 = vmatpush1.msra.mxu0 %v733
    %767 = vmatprep.subr.mxu0 %v736
    %768 = vmatpush1.msra.mxu0 %v735
    %769 = vmatprep.subr.mxu0 %v738
    %770 = vmatpush1.msra.mxu0 %v737
    %771 = vmatprep.subr.mxu0 %v740
    %772 = vmatpush1.msra.mxu0 %v739
    %773 = vmatprep.subr.mxu0 %v742
    %774 = vmatpush1.msra.mxu0 %v741
    %775 = vmatprep.subr.mxu0 %v744
    %776 = vmatpush1.msra.mxu0 %v743
    %777 = vmatprep.subr.mxu0 %v746
    %778 = vmatpush1.msra.mxu0 %v745
    %779 = vmatprep.subr.mxu0 %v748
    %780 = vmatpush1.msra.mxu0 %v747
    %781 = vmatprep.subr.mxu0 %v750
    %782 = vmatpush1.msra.mxu0 %v749
    %783 = vmatprep.subr.mxu0 %v752
    %784 = vmatpush1.msra.mxu0 %v751
    %785 = vmatprep.subr.mxu0 %v754
    %786 = vmatpush1.msra.mxu0 %v753
    %787 = vmatprep.subr.mxu0 %v756
    %788 = vmatpush1.msra.mxu0 %v755
    %789 = vmatprep.subr.mxu0 0.0
    %790 = vmatpush1.msra.mxu0 0.0
    %791 = vmatprep.subr.mxu0 0.0
    %792 = vmatpush1.msra.mxu0 0.0
    %793 = vmatprep.subr.mxu0 0.0
    %794 = vmatpush1.msra.mxu0 0.0
    %795 = vmatprep.subr.mxu0 0.0
    %796 = vmatpush1.msra.mxu0 0.0
    %797 = vmatprep.subr.mxu0 0.0
    %798 = vmatpush1.msra.mxu0 0.0
    %799 = vmatprep.subr.mxu0 0.0
    %800 = vmatpush1.msra.mxu0 0.0
    %801 = vmatprep.subr.mxu0 0.0
    %802 = vmatpush1.msra.mxu0 0.0
    %803 = vmatprep.subr.mxu0 0.0
    %804 = vmatpush1.msra.mxu0 0.0
    %805 = vmatprep.subr.mxu0 0.0
    %806 = vmatpush1.msra.mxu0 0.0
    %807 = vmatprep.subr.mxu0 0.0
    %808 = vmatpush1.msra.mxu0 0.0
    %809 = vmatprep.subr.mxu0 0.0
    %810 = vmatpush1.msra.mxu0 0.0
    %811 = vmatprep.subr.mxu0 0.0
    %812 = vmatpush1.msra.mxu0 0.0
    %813 = vmatprep.subr.mxu0 0.0
    %814 = vmatpush1.msra.mxu0 0.0
    %815 = vmatprep.subr.mxu0 0.0
    %816 = vmatpush1.msra.mxu0 0.0
    %817 = vmatprep.subr.mxu0 0.0
    %818 = vmatpush1.msra.mxu0 0.0
    %819 = vmatprep.subr.mxu0 0.0
    %820 = vmatpush1.msra.mxu0 0.0
    %821 = vmatprep.mubr.f32.mxu0 0.0
    %822 = vmatmul.mubr.f32.gmra.mrb[0].mxu0 %v543
    %v823 = vpop.f32.mrb[0].mxu0
    %v824 = vadd.f32 0.0, %v823
    %v825 = vpop.f32.mrb[0].mxu0
    %v826 = vadd.f32 0.0, %v825
    %827 = vmatprep.mubr.f32.mxu0 0.0
    %828 = vmatmul.mubr.f32.gmra.mrb[0].mxu0 %v544
    %v829 = vpop.f32.mrb[0].mxu0
    %v830 = vadd.f32 0.0, %v829
    %v831 = vpop.f32.mrb[0].mxu0
    %v832 = vadd.f32 0.0, %v831
    %833 = vmatprep.mubr.f32.mxu0 0.0
    %834 = vmatmul.mubr.f32.gmra.mrb[0].mxu0 %v545
    %v835 = vpop.f32.mrb[0].mxu0
    %v836 = vadd.f32 0.0, %v835
    %v837 = vpop.f32.mrb[0].mxu0
    %v838 = vadd.f32 0.0, %v837
    %839 = vmatprep.mubr.f32.mxu0 0.0
    %840 = vmatmul.mubr.f32.gmra.mrb[0].mxu0 %v546
    %v841 = vpop.f32.mrb[0].mxu0
    %v842 = vadd.f32 0.0, %v841
    %v843 = vpop.f32.mrb[0].mxu0
    %v844 = vadd.f32 0.0, %v843
    %845 = vmatprep.mubr.f32.mxu0 0.0
    %846 = vmatmul.mubr.f32.gmra.mrb[0].mxu0 %v547
    %v847 = vpop.f32.mrb[0].mxu0
    %v848 = vadd.f32 0.0, %v847
    %v849 = vpop.f32.mrb[0].mxu0
    %v850 = vadd.f32 0.0, %v849
    %851 = vdwg.mxu0
    %v852 = vmul.f32 %v824, %v683
    %v853 = vmul.f32 %v826, %v683
    %v854 = vmul.f32 %v830, %v688
    %v855 = vmul.f32 %v832, %v688
    %v856 = vmul.f32 %v836, %v693
    %v857 = vmul.f32 %v838, %v693
    %v858 = vmul.f32 %v842, %v698
    %v859 = vmul.f32 %v844, %v698
    %v860 = vmul.f32 %v848, %v703
    %v861 = vmul.f32 %v850, %v703
    %s862 = scalar_lea.vmem [#allocation8], 80
    %863 = vst [vmem:[%s862] sm:$0xff] %v852
    %864 = vst [vmem:[%s862 + $0x8] sm:$0xff] %v853
    %865 = vst [vmem:[%s862 + $0x10] sm:$0xff] %v854
    %866 = vst [vmem:[%s862 + $0x18] sm:$0xff] %v855
    %867 = vst [vmem:[%s862 + $0x20] sm:$0xff] %v856
    %868 = vst [vmem:[%s862 + $0x28] sm:$0xff] %v857
    %869 = vst [vmem:[%s862 + $0x30] sm:$0xff] %v858
    %870 = vst [vmem:[%s862 + $0x38] sm:$0xff] %v859
    %871 = vst [vmem:[%s862 + $0x40] sm:$0xff] %v860
    %872 = vst [vmem:[%s862 + $0x48] sm:$0xff] %v861
    // Predicated region
    $region26: #{tpu_custom_call.1} parent=1 // pred_check
      _
    $region27: #{tpu_custom_call.1} parent=1 // pred_check_branch
      %874 = sbr.rel (0) target = $region29
    $region28: #{tpu_custom_call.1} parent=1 // pred_region
      %s876 = ssub.s32 2560, 2560
      %877 = vsyncadd [#allocation5], %s876
      %s878 = sshll.u32 [#allocation8], 4
      %s879 = int_to_ptr.vmem [resolvable:$true] %s878
      %884 = dma.vmem_to_hbm [thread:$0]  %s879, 2560, %s4, [#allocation5], 256, 256, 16
    $region29: #{tpu_custom_call.1} parent=1 // pred_fallthru
      _
    // Predicated region
    $region30: #{tpu_custom_call.1} parent=1 // pred_check
      _
    $region31: #{tpu_custom_call.1} parent=1 // pred_check_branch
      %886 = sbr.rel (0) target = $region33
    $region32: #{tpu_custom_call.1} parent=1 // pred_region
      %887 = dma.done [#allocation5], 2560
    $region33: #{tpu_custom_call.1} parent=1 // pred_fallthru
      _
    %888 = vsyncpa [#allocation4], 1
    %889 = vsyncpa [#allocation7], 1
    %890 = vsyncpa [#allocation5], 1

</llo_original>
